<compile_context>
chip_gen: v5e
topology: v5e:2x2
jax: 0.10.0
libtpu: 0.0.40
codegen_flags: <defaults>
</compile_context>

<pallas_src>
import jax
import jax.numpy as jnp
import numpy as np
from jax.experimental import pallas as pl
from jax.experimental.pallas import tpu as pltpu

# ---------------- model hyper-parameters (small, consistent with module) ----
B = 2            # batch
C_IN = 3         # image channels (pixel_values)
H = W = 16       # spatial
K = 3            # conv kernel size (padding=1, stride=1)
C_OUT = 16       # TSN backbone conv channels
PROJ_DIM = 32    # tsn.projection_dim
HIDDEN = 64      # paligemma hidden_size (small stand-in for 1408)

HW = H * W                   # 256 spatial positions
P = K * K * C_IN             # 27  (im2col patch length)
P_PAD = 32                   # padded contraction; column 27 is the bias column
SUB = 8                      # spatial positions packed per sublane row
ROWS_BD = HW // SUB          # 32 block-diag rows per batch
K_BD = SUB * P_PAD           # 256 contraction for the block-diag conv matmul
CONV_BD_OUT = SUB * C_OUT    # 128 lane-dense conv output width
HEAD_OUT = 128               # packed head output: [tsn(32) | proj(64) | pad(32)]


# ---------------------------- Pallas kernel ---------------------------------
def tsn_direct_kernel(patch_ref, wconv_ref, whead_ref, bhead_ref, out_ref):
    # patch_ref : (ROWS_BD, K_BD)        bf16  one batch's im2col patches,
    #                                          8 spatial positions per row,
    #                                          bias column = 1.0
    # wconv_ref : (K_BD, CONV_BD_OUT)    bf16  block-diag conv weight (+bias row)
    # whead_ref : (CONV_BD_OUT, HEAD_OUT) f32  R @ [w_fc | w_fc@w_proj | 0]
    # bhead_ref : (1, HEAD_OUT)          f32  [b_fc | b_fc@w_proj + b_proj | 0]
    # out_ref   : (1, 1, HEAD_OUT)       f32  packed [tsn | proj | 0] row

    # 3x3 conv (+ bias, folded into the contraction) as ONE lane-dense bf16
    # MXU matmul with f32 accumulation; ReLU on a dense (32,128) f32 tile.
    conv = jnp.dot(patch_ref[...], wconv_ref[...],
                   preferred_element_type=jnp.float32)            # (32, 128)
    conv = jnp.maximum(conv, 0.0)

    # Global average pool over HW as an MXU matmul against a constant 1/HW
    # matrix (8 identical rows keep all matmul dims sublane-friendly).
    pool = jnp.full((SUB, ROWS_BD), 1.0 / HW, dtype=jnp.float32)   # (8, 32)
    pooled = jnp.dot(pool, conv,
                     preferred_element_type=jnp.float32)           # (8, 128)

    # Fused lane-block sum + TSN head + feature_projection in one matmul,
    # then a single lane-dense (1,128) output row store.
    out = jnp.dot(pooled, whead_ref[...],
                  preferred_element_type=jnp.float32)              # (8, 128)
    out_ref[...] = (out[0:1] + bhead_ref[...]).reshape(1, 1, HEAD_OUT)


# ------------------------------ wrappers -------------------------------------
def im2col_nchw(pixel_values_nchw, k=K, pad=1):
    """NCHW -> NHWC -> (B, H*W, K*K*C) patches. Patch inner order = (kh, kw, cin)."""
    x = jnp.transpose(pixel_values_nchw, (0, 2, 3, 1))             # NHWC
    b, h, w, c = x.shape
    xp = jnp.pad(x, ((0, 0), (pad, pad), (pad, pad), (0, 0)))
    cols = [xp[:, dh:dh + h, dw:dw + w, :] for dh in range(k) for dw in range(k)]
    patches = jnp.stack(cols, axis=3)                              # (B,H,W,K*K,C)
    return patches.reshape(b, h * w, k * k * c)


def prepare_packed_params(params):
    """One-time packing of module parameters into kernel operands (hoisted out
    of the forward path so the pallas_call isn't preceded by tiny XLA ops)."""
    # conv weight in im2col layout with the bias folded into contraction row P
    w_conv = jnp.concatenate(
        [params['w_conv'],                                         # (27, 16)
         params['b_conv'],                                         # row 27 = bias
         jnp.zeros((P_PAD - P - 1, C_OUT), jnp.float32)], axis=0)  # (32, 16)
    # block-diagonalize so the conv result is 128 lanes wide
    w_conv_bd = jnp.kron(jnp.eye(SUB, dtype=jnp.float32),
                         w_conv).astype(jnp.bfloat16)              # (256, 128)

    # packed head [w_fc | w_fc @ w_proj | 0], lifted through the lane-block
    # replication matrix R so one (128,128) matmul does lane-block sum + heads.
    # Note: proj = pooled @ (w_fc@w_proj) + (b_fc@w_proj + b_proj) is
    # algebraically equal to (pooled@w_fc + b_fc)@w_proj + b_proj; the float
    # associativity differs slightly from the PyTorch reference by design.
    w_fused = params['w_fc'] @ params['w_proj']                    # (16, 64)
    pad_cols = HEAD_OUT - PROJ_DIM - HIDDEN
    w_head = jnp.concatenate(
        [params['w_fc'], w_fused,
         jnp.zeros((C_OUT, pad_cols), jnp.float32)], axis=1)       # (16, 128)
    R = jnp.tile(jnp.eye(C_OUT, dtype=jnp.float32), (SUB, 1))      # (128, 16)
    w_head_comb = R @ w_head                                       # (128, 128)

    b_fused = params['b_fc'] @ params['w_proj'] + params['b_proj'] # (1, 64)
    b_head = jnp.concatenate(
        [params['b_fc'], b_fused,
         jnp.zeros((1, pad_cols), jnp.float32)], axis=1)           # (1, 128)

    return {'w_conv_bd': w_conv_bd, 'w_head_comb': w_head_comb, 'b_head': b_head}


def tsn_paligemma_direct_forward(pixel_values, packed):
    """Returns (tsn_features, projected_features) for the pixel path."""
    patches = im2col_nchw(pixel_values).astype(jnp.float32)        # (B, HW, P)
    patches = patches.reshape(B * HW, P)
    # padded contraction: column P is the bias column (=1), rest zero
    patches = jnp.concatenate(
        [patches,
         jnp.ones((B * HW, 1), jnp.float32),
         jnp.zeros((B * HW, P_PAD - P - 1), jnp.float32)], axis=1)  # (512, 32)
    patches_bd = patches.reshape(B * ROWS_BD, K_BD).astype(jnp.bfloat16)  # (64,256)

    cost = pl.CostEstimate(
        flops=2 * B * (ROWS_BD * K_BD * CONV_BD_OUT
                       + SUB * ROWS_BD * CONV_BD_OUT
                       + SUB * CONV_BD_OUT * HEAD_OUT),
        transcendentals=0,
        bytes_accessed=(patches_bd.size * 2
                        + packed['w_conv_bd'].size * 2
                        + packed['w_head_comb'].size * 4
                        + packed['b_head'].size * 4
                        + B * HEAD_OUT * 4))

    grid_spec = pltpu.PrefetchScalarGridSpec(
        num_scalar_prefetch=0,
        grid=(B,),
        in_specs=[
            # streamed per-batch patch slab
            pl.BlockSpec((ROWS_BD, K_BD), lambda b: (b, 0)),
            # weights stay VMEM-resident across grid steps (constant index maps)
            pl.BlockSpec((K_BD, CONV_BD_OUT), lambda b: (0, 0)),
            pl.BlockSpec((CONV_BD_OUT, HEAD_OUT), lambda b: (0, 0)),
            pl.BlockSpec((1, HEAD_OUT), lambda b: (0, 0)),
        ],
        # each program writes its own disjoint lane-dense (1,128) output row
        out_specs=pl.BlockSpec((1, 1, HEAD_OUT), lambda b: (b, 0, 0)),
    )

    packed_out = pl.pallas_call(
        tsn_direct_kernel,
        out_shape=jax.ShapeDtypeStruct((B, 1, HEAD_OUT), jnp.float32),
        grid_spec=grid_spec,
        compiler_params=pltpu.CompilerParams(
            dimension_semantics=("parallel",)),
        cost_estimate=cost,
    )(patches_bd, packed['w_conv_bd'], packed['w_head_comb'], packed['b_head'])

    packed_out = packed_out.reshape(B, HEAD_OUT)
    tsn_features = packed_out[:, :PROJ_DIM]
    projected = packed_out[:, PROJ_DIM:PROJ_DIM + HIDDEN]
    return tsn_features, projected


def make_params(key):
    """Deterministic parameter init (shapes implied by the module __init__)."""
    ks = jax.random.split(key, 8)
    scale = 0.05
    return {
        # TSN backbone conv, stored in im2col layout (K*K*Cin, Cout)
        'w_conv': scale * jax.random.normal(ks[0], (P, C_OUT), jnp.float32),
        'b_conv': scale * jax.random.normal(ks[1], (1, C_OUT), jnp.float32),
        # TSN head -> projection_dim
        'w_fc': scale * jax.random.normal(ks[2], (C_OUT, PROJ_DIM), jnp.float32),
        'b_fc': scale * jax.random.normal(ks[3], (1, PROJ_DIM), jnp.float32),
        # feature_projection: Linear(projection_dim, hidden_dim)
        'w_proj': scale * jax.random.normal(ks[4], (PROJ_DIM, HIDDEN), jnp.float32),
        'b_proj': scale * jax.random.normal(ks[5], (1, HIDDEN), jnp.float32),
        # combination_layer: defined in __init__ but never used in forward();
        # initialized for parity, not computed.
        'w_comb': scale * jax.random.normal(ks[6], (2 * HIDDEN, HIDDEN), jnp.float32),
        'b_comb': scale * jax.random.normal(ks[7], (1, HIDDEN), jnp.float32),
    }


def reference_forward(pixel_values, params, conv_dtype=jnp.float32):
    """Pure-JAX reference. conv_dtype=bf16 matches the kernel's MXU precision."""
    patches = im2col_nchw(pixel_values).astype(jnp.float32)
    p = patches.astype(conv_dtype).astype(jnp.float32)
    w = params['w_conv'].astype(conv_dtype).astype(jnp.float32)
    b = params['b_conv'].astype(conv_dtype).astype(jnp.float32)
    conv = jnp.einsum('bnp,pc->bnc', p, w) + b[None]
    conv = jnp.maximum(conv, 0.0)
    pooled = jnp.mean(conv, axis=1)
    tsn = pooled @ params['w_fc'] + params['b_fc']
    proj = tsn @ params['w_proj'] + params['b_proj']
    return tsn, proj


if __name__ == "__main__":
    key = jax.random.PRNGKey(0)
    k_px, k_par = jax.random.split(key)

    # pixel_values in PyTorch NCHW convention
    pixel_values = jax.random.normal(k_px, (B, C_IN, H, W), jnp.float32)
    params = make_params(k_par)

    # one-time parameter packing (hoisted out of the forward path)
    packed = prepare_packed_params(params)
    packed = jax.tree_util.tree_map(jax.block_until_ready, packed)

    forward = jax.jit(tsn_paligemma_direct_forward)
    tsn_features, projected_features = forward(pixel_values, packed)
    jax.block_until_ready((tsn_features, projected_features))

    # 1) tight check vs a reference using the same bf16 MXU-operand precision
    tsn_ref_bf, proj_ref_bf = reference_forward(pixel_values, params,
                                                conv_dtype=jnp.bfloat16)
    np.testing.assert_allclose(np.asarray(tsn_features), np.asarray(tsn_ref_bf),
                               rtol=1e-3, atol=1e-4)
    np.testing.assert_allclose(np.asarray(projected_features),
                               np.asarray(proj_ref_bf), rtol=1e-3, atol=1e-4)

    # 2) loose check vs the pure-f32 reference (bf16 conv-operand rounding)
    tsn_ref32, proj_ref32 = reference_forward(pixel_values, params,
                                              conv_dtype=jnp.float32)
    np.testing.assert_allclose(np.asarray(tsn_features), np.asarray(tsn_ref32),
                               rtol=5e-2, atol=5e-3)
    np.testing.assert_allclose(np.asarray(projected_features),
                               np.asarray(proj_ref32), rtol=5e-2, atol=5e-3)

    assert tsn_features.shape == (B, PROJ_DIM)
    assert projected_features.shape == (B, HIDDEN)
    print("KERNEL_OK")
</pallas_src>

<mosaic_0001>
module attributes {stable_mosaic.version = 11 : i64} {
  func.func @tsn_direct_kernel(%arg0: i32, %arg1: memref<32x256xbf16, #tpu.memory_space<vmem>>, %arg2: memref<256x128xbf16, #tpu.memory_space<vmem>>, %arg3: memref<128x128xf32, #tpu.memory_space<vmem>>, %arg4: memref<1x128xf32, #tpu.memory_space<vmem>>, %arg5: memref<1x1x128xf32, #tpu.memory_space<vmem>>) attributes {dimension_semantics = [#tpu.dimension_semantics<parallel>], iteration_bounds = array<i64: 2>, scalar_prefetch = 0 : i64, scratch_operands = 0 : i64, tpu.core_type = #tpu.core_type<tc>, window_params = [{transform_indices = @transform_0, window_bounds = array<i64: 32, 256>}, {pipeline_mode = #tpu.pipeline_mode<synchronous>, transform_indices = @transform_1, window_bounds = array<i64: 256, 128>}, {pipeline_mode = #tpu.pipeline_mode<synchronous>, transform_indices = @transform_2, window_bounds = array<i64: 128, 128>}, {pipeline_mode = #tpu.pipeline_mode<synchronous>, transform_indices = @transform_3, window_bounds = array<i64: 1, 128>}, {transform_indices = @transform_4, window_bounds = array<i64: 1, 1, 128>}]} {
    %c0 = arith.constant 0 : index
    %c0_0 = arith.constant 0 : index
    %0 = vector.load %arg1[%c0, %c0_0] : memref<32x256xbf16, #tpu.memory_space<vmem>>, vector<32x256xbf16>
    %c0_1 = arith.constant 0 : index
    %c0_2 = arith.constant 0 : index
    %1 = vector.load %arg2[%c0_1, %c0_2] : memref<256x128xbf16, #tpu.memory_space<vmem>>, vector<256x128xbf16>
    %cst = arith.constant dense<0.000000e+00> : vector<32x128xf32>
    %2 = tpu.matmul %0, %1, %cst {dimension_numbers = #tpu.dot_dimension_numbers<[1], [0], [0], [1], [0, 0, 1, 1], [], []>} : vector<32x256xbf16>, vector<256x128xbf16>, vector<32x128xf32> -> vector<32x128xf32>
    %cst_3 = arith.constant 0.000000e+00 : f32
    %3 = vector.broadcast %cst_3 : f32 to vector<32x128xf32>
    %4 = arith.maximumf %2, %3 : vector<32x128xf32>
    %cst_4 = arith.constant 3.906250e-03 : f32
    %5 = vector.broadcast %cst_4 : f32 to vector<8x32xf32>
    %cst_5 = arith.constant dense<0.000000e+00> : vector<8x128xf32>
    %6 = tpu.matmul %5, %4, %cst_5 {dimension_numbers = #tpu.dot_dimension_numbers<[1], [0], [0], [1], [0, 0, 1, 1], [], []>} : vector<8x32xf32>, vector<32x128xf32>, vector<8x128xf32> -> vector<8x128xf32>
    %c0_6 = arith.constant 0 : index
    %c0_7 = arith.constant 0 : index
    %7 = vector.load %arg3[%c0_6, %c0_7] : memref<128x128xf32, #tpu.memory_space<vmem>>, vector<128x128xf32>
    %cst_8 = arith.constant dense<0.000000e+00> : vector<8x128xf32>
    %8 = tpu.matmul %6, %7, %cst_8 {dimension_numbers = #tpu.dot_dimension_numbers<[1], [0], [0], [1], [0, 0, 1, 1], [], []>} : vector<8x128xf32>, vector<128x128xf32>, vector<8x128xf32> -> vector<8x128xf32>
    %9 = vector.extract_strided_slice %8 {offsets = [0, 0], sizes = [1, 128], strides = [1, 1]} : vector<8x128xf32> to vector<1x128xf32>
    %c0_9 = arith.constant 0 : index
    %c0_10 = arith.constant 0 : index
    %10 = vector.load %arg4[%c0_9, %c0_10] : memref<1x128xf32, #tpu.memory_space<vmem>>, vector<1x128xf32>
    %11 = arith.addf %9, %10 : vector<1x128xf32>
    %12 = vector.shape_cast %11 : vector<1x128xf32> to vector<1x1x128xf32>
    %c0_11 = arith.constant 0 : index
    %c0_12 = arith.constant 0 : index
    %c0_13 = arith.constant 0 : index
    %13 = vector.load %arg5[%c0_11, %c0_12, %c0_13] : memref<1x1x128xf32, #tpu.memory_space<vmem>>, vector<1x1x128xf32>
    tpu.vector_store %arg5[%c0_11, %c0_12, %c0_13], %12 {strides = array<i32>} : memref<1x1x128xf32, #tpu.memory_space<vmem>>, vector<1x1x128xf32>,
    return
  }
  func.func @transform_0(%arg0: i32) -> (i32, i32) {
    %c0_i32 = arith.constant 0 : i32
    %c0_i32_0 = arith.constant 0 : i32
    return %arg0, %c0_i32 : i32, i32
  }
  func.func @transform_1(%arg0: i32) -> (i32, i32) {
    %c0_i32 = arith.constant 0 : i32
    %c0_i32_0 = arith.constant 0 : i32
    %c0_i32_1 = arith.constant 0 : i32
    return %c0_i32, %c0_i32_0 : i32, i32
  }
  func.func @transform_2(%arg0: i32) -> (i32, i32) {
    %c0_i32 = arith.constant 0 : i32
    %c0_i32_0 = arith.constant 0 : i32
    %c0_i32_1 = arith.constant 0 : i32
    return %c0_i32, %c0_i32_0 : i32, i32
  }
  func.func @transform_3(%arg0: i32) -> (i32, i32) {
    %c0_i32 = arith.constant 0 : i32
    %c0_i32_0 = arith.constant 0 : i32
    %c0_i32_1 = arith.constant 0 : i32
    return %c0_i32, %c0_i32_0 : i32, i32
  }
  func.func @transform_4(%arg0: i32) -> (i32, i32, i32) {
    %c0_i32 = arith.constant 0 : i32
    %c0_i32_0 = arith.constant 0 : i32
    %c0_i32_1 = arith.constant 0 : i32
    return %arg0, %c0_i32, %c0_i32_0 : i32, i32, i32
  }
}

</mosaic_0001>

<llo_original>
// kernel: tsn_paligemma_direct_forward.1
$region0: #{tsn_paligemma_direct_forward.1}
  #allocation0 [shape = 'u32[]', space=smem, size = 0x4, offset = 0x4, fixed_abs, tag = 'smem constant byte address 0x4 - core index']
  #allocation1 [shape = 'u32[72,128]{1,0:T(1,128)}', space=vmem, size = 0x9000, scoped, tag = 'internal scratch']
  %s0 = inlined_call_operand.vmem [shape: bf16[64,256], index: 0, kind: input, shape index: {}]
  %s1 = inlined_call_operand.vmem [shape: bf16[256,128], index: 1, kind: input, shape index: {}]
  %s2 = inlined_call_operand.vmem [shape: f32[128,128], index: 2, kind: input, shape index: {}]
  %s3 = inlined_call_operand.vmem [shape: f32[1,128], index: 3, kind: input, shape index: {}]
  %s4 = inlined_call_operand.vmem [shape: f32[2,1,128], index: 4, kind: output, shape index: {}]
  %s5 = sld [smem:[#allocation0]]
  $region49: #{tsn_paligemma_direct_forward.1} parent=0
    _
  %s7 = ssub.s32 1, %s5
  %s8 = scalar_select 0, %s7, %s5
  loop: start=0, step=1, limit=4
  $region2: #{tsn_paligemma_direct_forward.1} parent=0 // loop_pre_header
    _
  $region3: #{tsn_paligemma_direct_forward.1} parent=0 // loop_header
    %s10 = sphi 0, %s14
    %p11 = scmp.ge.s32.totalorder %s10, 4
    %s20 = sphi 0, %s22
    %s23 = sphi 0, %s20
    %s24 = sphi 0, %s23
    %s40 = sphi 0, %s24
    %s44 = sphi 0, %s44
    %s46 = sphi 0, %s44
    %s47 = sphi 0, %s46
    %s61 = sphi 0, %s47
    %s65 = sphi 0, %s65
    %s67 = sphi 0, %s65
    %s68 = sphi 0, %s67
    %s82 = sphi 0, %s68
    %s86 = sphi 0, %s86
    %s88 = sphi 0, %s86
    %s89 = sphi 0, %s88
    %s103 = sphi 0, %s89
    %s109 = sphi 0, %s111
    %s112 = sphi 0, %s109
    %s113 = sphi 0, %s112
    %s129 = sphi 0, %s113
  $region4: #{tsn_paligemma_direct_forward.1} parent=0 // loop_header_branch
    %13 = sbr.rel (%p11) target = $region8
  $region5: #{tsn_paligemma_direct_forward.1} parent=0 // loop_body
    %s15 = ssub.s32 %s10, 1
    %s16 = ssub.s32 %s10, 2
    %s17 = sadd.s32 %s10, 1
    %s18 = ssub.s32 %s10, %s17
    %p19 = scmp.eq.s32.totalorder %s18, 0
    %s21 = sadd.s32 %s20, 1
    %s22 = scalar_select %p19, %s20, %s21
    %p25 = pneg %p19
    %p26 = scmp.eq.s32.totalorder %s10, 1
    %p27 = por %p25, %p26
    %p28 = scmp.ne.s32.totalorder %s20, %s23
    %p29 = scmp.eq.s32.totalorder %s10, 0
    %p30 = por %p28, %p29
    %p31 = scmp.ne.s32.totalorder %s20, %s23
    %p32 = scmp.eq.s32.totalorder %s15, 1
    %p33 = por %p31, %p32
    %p34 = scmp.ne.s32.totalorder %s23, %s24
    %p35 = scmp.eq.s32.totalorder %s15, 0
    %p36 = por %p34, %p35
    %p37 = scmp.ne.s32.totalorder %s23, %s24
    %p38 = scmp.eq.s32.totalorder %s16, 1
    %p39 = por %p37, %p38
    %p41 = scmp.ne.s32.totalorder %s24, %s40
    %p42 = scmp.eq.s32.totalorder %s16, 0
    %p43 = por %p41, %p42
    %s45 = sadd.s32 %s44, 1
    %p48 = scmp.eq.s32.totalorder %s10, 1
    %p49 = scmp.ne.s32.totalorder %s44, %s46
    %p50 = scmp.eq.s32.totalorder %s10, 0
    %p51 = por %p49, %p50
    %p52 = scmp.ne.s32.totalorder %s44, %s46
    %p53 = scmp.eq.s32.totalorder %s15, 1
    %p54 = por %p52, %p53
    %p55 = scmp.ne.s32.totalorder %s46, %s47
    %p56 = scmp.eq.s32.totalorder %s15, 0
    %p57 = por %p55, %p56
    %p58 = scmp.ne.s32.totalorder %s46, %s47
    %p59 = scmp.eq.s32.totalorder %s16, 1
    %p60 = por %p58, %p59
    %p62 = scmp.ne.s32.totalorder %s47, %s61
    %p63 = scmp.eq.s32.totalorder %s16, 0
    %p64 = por %p62, %p63
    %s66 = sadd.s32 %s65, 1
    %p69 = scmp.eq.s32.totalorder %s10, 1
    %p70 = scmp.ne.s32.totalorder %s65, %s67
    %p71 = scmp.eq.s32.totalorder %s10, 0
    %p72 = por %p70, %p71
    %p73 = scmp.ne.s32.totalorder %s65, %s67
    %p74 = scmp.eq.s32.totalorder %s15, 1
    %p75 = por %p73, %p74
    %p76 = scmp.ne.s32.totalorder %s67, %s68
    %p77 = scmp.eq.s32.totalorder %s15, 0
    %p78 = por %p76, %p77
    %p79 = scmp.ne.s32.totalorder %s67, %s68
    %p80 = scmp.eq.s32.totalorder %s16, 1
    %p81 = por %p79, %p80
    %p83 = scmp.ne.s32.totalorder %s68, %s82
    %p84 = scmp.eq.s32.totalorder %s16, 0
    %p85 = por %p83, %p84
    %s87 = sadd.s32 %s86, 1
    %p90 = scmp.eq.s32.totalorder %s10, 1
    %p91 = scmp.ne.s32.totalorder %s86, %s88
    %p92 = scmp.eq.s32.totalorder %s10, 0
    %p93 = por %p91, %p92
    %p94 = scmp.ne.s32.totalorder %s86, %s88
    %p95 = scmp.eq.s32.totalorder %s15, 1
    %p96 = por %p94, %p95
    %p97 = scmp.ne.s32.totalorder %s88, %s89
    %p98 = scmp.eq.s32.totalorder %s15, 0
    %p99 = por %p97, %p98
    %p100 = scmp.ne.s32.totalorder %s88, %s89
    %p101 = scmp.eq.s32.totalorder %s16, 1
    %p102 = por %p100, %p101
    %p104 = scmp.ne.s32.totalorder %s89, %s103
    %p105 = scmp.eq.s32.totalorder %s16, 0
    %p106 = por %p104, %p105
    %s107 = ssub.s32 %s10, %s17
    %p108 = scmp.eq.s32.totalorder %s107, 0
    %s110 = sadd.s32 %s109, 1
    %s111 = scalar_select %p108, %s109, %s110
    %p114 = pneg %p108
    %p115 = scmp.eq.s32.totalorder %s10, 1
    %p116 = por %p114, %p115
    %p117 = scmp.ne.s32.totalorder %s109, %s112
    %p118 = scmp.eq.s32.totalorder %s10, 0
    %p119 = por %p117, %p118
    %p120 = scmp.ne.s32.totalorder %s109, %s112
    %p121 = scmp.eq.s32.totalorder %s15, 1
    %p122 = por %p120, %p121
    %p123 = scmp.ne.s32.totalorder %s112, %s113
    %p124 = scmp.eq.s32.totalorder %s15, 0
    %p125 = por %p123, %p124
    %p126 = scmp.ne.s32.totalorder %s112, %s113
    %p127 = scmp.eq.s32.totalorder %s16, 1
    %p128 = por %p126, %p127
    %p130 = scmp.ne.s32.totalorder %s113, %s129
    %p131 = scmp.eq.s32.totalorder %s16, 0
    %p132 = por %p130, %p131
    %p133 = scmp.le.s32.totalorder 1, %s10
    %p134 = scmp.lt.s32.totalorder %s10, 3
    %p135 = pnand %p133, %p134
    %p136 = pneg %p135
    // Predicated region
    $region9: #{tsn_paligemma_direct_forward.1} parent=5 // pred_check
      _
    $region10: #{tsn_paligemma_direct_forward.1} parent=5 // pred_check_branch
      %138 = sbr.rel (%p135) target = $region12
    $region11: #{tsn_paligemma_direct_forward.1} parent=5 // pred_region
      %s139 = ssub.s32 %s10, 1
      // Predicated region
      $region13: #{tsn_paligemma_direct_forward.1} parent=11 // pred_check
        %p140 = pneg %p57
      $region14: #{tsn_paligemma_direct_forward.1} parent=11 // pred_check_branch
        %142 = sbr.rel (%p140) target = $region16
      $region15: #{tsn_paligemma_direct_forward.1} parent=11 // pred_region
        _
      $region16: #{tsn_paligemma_direct_forward.1} parent=11 // pred_fallthru
        _
      // Predicated region
      $region17: #{tsn_paligemma_direct_forward.1} parent=11 // pred_check
        %p143 = pneg %p78
      $region18: #{tsn_paligemma_direct_forward.1} parent=11 // pred_check_branch
        %145 = sbr.rel (%p143) target = $region20
      $region19: #{tsn_paligemma_direct_forward.1} parent=11 // pred_region
        _
      $region20: #{tsn_paligemma_direct_forward.1} parent=11 // pred_fallthru
        _
      // Predicated region
      $region21: #{tsn_paligemma_direct_forward.1} parent=11 // pred_check
        %p146 = pneg %p99
      $region22: #{tsn_paligemma_direct_forward.1} parent=11 // pred_check_branch
        %148 = sbr.rel (%p146) target = $region24
      $region23: #{tsn_paligemma_direct_forward.1} parent=11 // pred_region
        _
      $region24: #{tsn_paligemma_direct_forward.1} parent=11 // pred_fallthru
        _
    $region12: #{tsn_paligemma_direct_forward.1} parent=5 // pred_fallthru
      _
    %p149 = scmp.lt.s32.totalorder %s10, 2
    // Predicated region
    $region25: #{tsn_paligemma_direct_forward.1} parent=5 // pred_check
      %p150 = pneg %p149
    $region26: #{tsn_paligemma_direct_forward.1} parent=5 // pred_check_branch
      %152 = sbr.rel (%p150) target = $region28
    $region27: #{tsn_paligemma_direct_forward.1} parent=5 // pred_region
      // Predicated region
      $region29: #{tsn_paligemma_direct_forward.1} parent=27 // pred_check
        %p153 = pneg %p30
      $region30: #{tsn_paligemma_direct_forward.1} parent=27 // pred_check_branch
        %155 = sbr.rel (%p153) target = $region32
      $region31: #{tsn_paligemma_direct_forward.1} parent=27 // pred_region
        %s156 = smul.u32 4, %s10
        %p157 = scmp.lt.s32.totalorder %s156, 7
        %s158 = scalar_select %p157, %s156, 7
        %s159 = smul.addr %s158, 2
        %s160 = smul.addr %s159, 4
        %s161 = scalar_lea.vmem %s0, %s160
        %s162 = smul.u32 4, %s10
      $region32: #{tsn_paligemma_direct_forward.1} parent=27 // pred_fallthru
        _
    $region28: #{tsn_paligemma_direct_forward.1} parent=5 // pred_fallthru
      _
    %p163 = scmp.le.s32.totalorder 1, %s10
    %p164 = scmp.lt.s32.totalorder %s10, 3
    %p165 = pnand %p163, %p164
    %p166 = pneg %p165
    // Predicated region
    $region33: #{tsn_paligemma_direct_forward.1} parent=5 // pred_check
      _
    $region34: #{tsn_paligemma_direct_forward.1} parent=5 // pred_check_branch
      %168 = sbr.rel (%p165) target = $region36
    $region35: #{tsn_paligemma_direct_forward.1} parent=5 // pred_region
      %s169 = ssub.s32 %s10, 1
      %s170 = smul.u32 4, %s15
      %p171 = scmp.lt.s32.totalorder %s170, 7
      %s172 = scalar_select %p171, %s170, 7
      %s173 = smul.addr %s172, 2
      %s174 = smul.addr %s173, 4
      %s175 = scalar_lea.vmem %s0, %s174
      %p176 = pneg %p36
      %p177 = pneg %p33
      %p178 = pneg %p57
      %p179 = pneg %p54
      %p180 = pneg %p78
      %p181 = pneg %p75
      %p182 = pneg %p99
      %p183 = pneg %p96
      %p184 = pneg %p125
      %p185 = pneg %p122
      %p186 = scmp.lt.s32.totalorder %s15, 1
      %s187 = scalar_select %p186, %s15, 1
      %s188 = scalar_lea.vmem %s4, %s187
      %s189 = smul.u32 4, %s15
      %p190 = scmp.lt.s32.totalorder %s189, 7
      %s191 = scalar_select %p190, %s189, 7
      %s192 = smul.addr %s191, 2
      %s193 = smul.addr %s192, 4
      %s194 = scalar_lea.vmem %s0, %s193
      %s195 = smul.u32 4, %s15
      %p196 = scmp.lt.s32.totalorder %s15, 1
      %s197 = scalar_select %p196, %s15, 1
      %s198 = scalar_lea.vmem %s4, %s197
      %v199 = vld [vmem:[%s194] sm:$0xff]
      %v200 = vld [vmem:[%s194 + $0x8] sm:$0xff]
      %v201 = vld [vmem:[%s194 + $0x10] sm:$0xff]
      %v202 = vld [vmem:[%s194 + $0x18] sm:$0xff]
      %v203 = vld [vmem:[%s1] sm:$0xf]
      %v204 = vld [vmem:[%s1 + $0x4] sm:$0xf]
      %v205 = vld [vmem:[%s1 + $0x8] sm:$0xf]
      %v206 = vld [vmem:[%s1 + $0xc] sm:$0xf]
      %v207 = vld [vmem:[%s1 + $0x10] sm:$0xf]
      %v208 = vld [vmem:[%s1 + $0x14] sm:$0xf]
      %v209 = vld [vmem:[%s1 + $0x18] sm:$0xf]
      %v210 = vld [vmem:[%s1 + $0x1c] sm:$0xf]
      %v211 = vld [vmem:[%s1 + $0x20] sm:$0xf]
      %v212 = vld [vmem:[%s1 + $0x24] sm:$0xf]
      %v213 = vld [vmem:[%s1 + $0x28] sm:$0xf]
      %v214 = vld [vmem:[%s1 + $0x2c] sm:$0xf]
      %v215 = vld [vmem:[%s1 + $0x30] sm:$0xf]
      %v216 = vld [vmem:[%s1 + $0x34] sm:$0xf]
      %v217 = vld [vmem:[%s1 + $0x38] sm:$0xf]
      %v218 = vld [vmem:[%s1 + $0x3c] sm:$0xf]
      %v219 = vld [vmem:[%s1 + $0x40] sm:$0xf]
      %v220 = vld [vmem:[%s1 + $0x44] sm:$0xf]
      %v221 = vld [vmem:[%s1 + $0x48] sm:$0xf]
      %v222 = vld [vmem:[%s1 + $0x4c] sm:$0xf]
      %v223 = vld [vmem:[%s1 + $0x50] sm:$0xf]
      %v224 = vld [vmem:[%s1 + $0x54] sm:$0xf]
      %v225 = vld [vmem:[%s1 + $0x58] sm:$0xf]
      %v226 = vld [vmem:[%s1 + $0x5c] sm:$0xf]
      %v227 = vld [vmem:[%s1 + $0x60] sm:$0xf]
      %v228 = vld [vmem:[%s1 + $0x64] sm:$0xf]
      %v229 = vld [vmem:[%s1 + $0x68] sm:$0xf]
      %v230 = vld [vmem:[%s1 + $0x6c] sm:$0xf]
      %v231 = vld [vmem:[%s1 + $0x70] sm:$0xf]
      %v232 = vld [vmem:[%s1 + $0x74] sm:$0xf]
      %v233 = vld [vmem:[%s1 + $0x78] sm:$0xf]
      %v234 = vld [vmem:[%s1 + $0x7c] sm:$0xf]
      %v239 = vunpack.c.l.b16 %v199
      %v240 = vunpack.c.h.b16 %v199
      %v241 = vunpack.c.l.b16 %v200
      %v242 = vunpack.c.h.b16 %v200
      %v243 = vunpack.c.l.b16 %v201
      %v244 = vunpack.c.h.b16 %v201
      %v245 = vunpack.c.l.b16 %v202
      %v246 = vunpack.c.h.b16 %v202
      %v247 = vpack.c.b16 %v241, %v239
      %v248 = vpack.c.b16 %v242, %v240
      %v249 = vpack.c.b16 %v245, %v243
      %v250 = vpack.c.b16 %v246, %v244
      %v287 = vunpack.c.l.b16 %v203
      %v288 = vunpack.c.l.b16 %v204
      %v289 = vunpack.c.l.b16 %v205
      %v290 = vunpack.c.l.b16 %v206
      %v291 = vunpack.c.l.b16 %v207
      %v292 = vunpack.c.l.b16 %v208
      %v293 = vunpack.c.l.b16 %v209
      %v294 = vunpack.c.l.b16 %v210
      %v295 = vunpack.c.l.b16 %v211
      %v296 = vunpack.c.l.b16 %v212
      %v297 = vunpack.c.l.b16 %v213
      %v298 = vunpack.c.l.b16 %v214
      %v299 = vunpack.c.l.b16 %v215
      %v300 = vunpack.c.l.b16 %v216
      %v301 = vunpack.c.l.b16 %v217
      %v302 = vunpack.c.l.b16 %v218
      %v303 = vunpack.c.l.b16 %v219
      %v304 = vunpack.c.l.b16 %v220
      %v305 = vunpack.c.l.b16 %v221
      %v306 = vunpack.c.l.b16 %v222
      %v307 = vunpack.c.l.b16 %v223
      %v308 = vunpack.c.l.b16 %v224
      %v309 = vunpack.c.l.b16 %v225
      %v310 = vunpack.c.l.b16 %v226
      %v311 = vunpack.c.l.b16 %v227
      %v312 = vunpack.c.l.b16 %v228
      %v313 = vunpack.c.l.b16 %v229
      %v314 = vunpack.c.l.b16 %v230
      %v315 = vunpack.c.l.b16 %v231
      %v316 = vunpack.c.l.b16 %v232
      %v317 = vunpack.c.l.b16 %v233
      %v318 = vunpack.c.l.b16 %v234
      %v319 = vpack.c.b16 %v288, %v287
      %v320 = vpack.c.b16 %v290, %v289
      %v321 = vpack.c.b16 %v292, %v291
      %v322 = vpack.c.b16 %v294, %v293
      %v323 = vpack.c.b16 %v296, %v295
      %v324 = vpack.c.b16 %v298, %v297
      %v325 = vpack.c.b16 %v300, %v299
      %v326 = vpack.c.b16 %v302, %v301
      %v327 = vpack.c.b16 %v304, %v303
      %v328 = vpack.c.b16 %v306, %v305
      %v329 = vpack.c.b16 %v308, %v307
      %v330 = vpack.c.b16 %v310, %v309
      %v331 = vpack.c.b16 %v312, %v311
      %v332 = vpack.c.b16 %v314, %v313
      %v333 = vpack.c.b16 %v316, %v315
      %v334 = vpack.c.b16 %v318, %v317
      %351 = vmatpush.bf16.msra.mxu0 %v326
      %352 = vmatpush.bf16.msra.mxu0 %v325
      %353 = vmatpush.bf16.msra.mxu0 %v324
      %354 = vmatpush.bf16.msra.mxu0 %v323
      %355 = vmatpush.bf16.msra.mxu0 %v322
      %356 = vmatpush.bf16.msra.mxu0 %v321
      %357 = vmatpush.bf16.msra.mxu0 %v320
      %358 = vmatpush.bf16.msra.mxu0 %v319
      %359 = vmatmul.bf16.gmra.mxu0 %v247
      %v360 = vpop.f32.mrf.mxu0
      %v361 = vadd.f32 0.0, %v360
      %v362 = vpop.f32.mrf.mxu0
      %v363 = vadd.f32 0.0, %v362
      %364 = vmatmul.bf16.gmra.mxu0 %v249
      %v365 = vpop.f32.mrf.mxu0
      %v366 = vadd.f32 0.0, %v365
      %v367 = vpop.f32.mrf.mxu0
      %v368 = vadd.f32 0.0, %v367
      %369 = vdwg.mxu0
      %370 = vmatpush.bf16.msra.mxu0 %v334
      %371 = vmatpush.bf16.msra.mxu0 %v333
      %372 = vmatpush.bf16.msra.mxu0 %v332
      %373 = vmatpush.bf16.msra.mxu0 %v331
      %374 = vmatpush.bf16.msra.mxu0 %v330
      %375 = vmatpush.bf16.msra.mxu0 %v329
      %376 = vmatpush.bf16.msra.mxu0 %v328
      %377 = vmatpush.bf16.msra.mxu0 %v327
      %378 = vmatmul.bf16.gmra.mxu0 %v248
      %v379 = vpop.f32.mrf.mxu0
      %v380 = vadd.f32 %v361, %v379
      %v381 = vpop.f32.mrf.mxu0
      %v382 = vadd.f32 %v363, %v381
      %383 = vmatmul.bf16.gmra.mxu0 %v250
      %v384 = vpop.f32.mrf.mxu0
      %v385 = vadd.f32 %v366, %v384
      %v386 = vpop.f32.mrf.mxu0
      %v387 = vadd.f32 %v368, %v386
      %388 = vdwg.mxu0
      %v389 = vmax.f32 %v380, 0.0
      %v390 = vmax.f32 %v382, 0.0
      %v391 = vmax.f32 %v385, 0.0
      %v392 = vmax.f32 %v387, 0.0
      %vm393 = vcmask 261120
      %v395 = vsel %vm393, 0.00390625, 0
      %397 = vmatpush.msra.mxu0 0.0
      %398 = vmatpush.msra.mxu0 0.0
      %399 = vmatpush.msra.mxu0 0.0
      %400 = vmatpush.msra.mxu0 0.0
      %401 = vmatpush.msra.mxu0 0.0
      %402 = vmatpush.msra.mxu0 0.0
      %403 = vmatpush.msra.mxu0 0.0
      %404 = vmatpush.msra.mxu0 0.0
      %405 = vmatpush.msra.mxu0 0.0
      %406 = vmatpush.msra.mxu0 0.0
      %407 = vmatpush.msra.mxu0 0.0
      %408 = vmatpush.msra.mxu0 0.0
      %409 = vmatpush.msra.mxu0 %v392
      %410 = vmatpush.msra.mxu0 %v391
      %411 = vmatpush.msra.mxu0 %v390
      %412 = vmatpush.msra.mxu0 %v389
      %413 = vmatmul.f32.gmra.mxu0 %v395
      %v414 = vpop.f32.mrf.mxu0
      %v415 = vadd.f32 0.0, %v414
      %416 = vdwg.mxu0
      %v417 = vld [vmem:[%s2] sm:$0xff]
      %v418 = vld [vmem:[%s2 + $0x8] sm:$0xff]
      %v419 = vld [vmem:[%s2 + $0x10] sm:$0xff]
      %v420 = vld [vmem:[%s2 + $0x18] sm:$0xff]
      %v421 = vld [vmem:[%s2 + $0x20] sm:$0xff]
      %v422 = vld [vmem:[%s2 + $0x28] sm:$0xff]
      %v423 = vld [vmem:[%s2 + $0x30] sm:$0xff]
      %v424 = vld [vmem:[%s2 + $0x38] sm:$0xff]
      %v425 = vld [vmem:[%s2 + $0x40] sm:$0xff]
      %v426 = vld [vmem:[%s2 + $0x48] sm:$0xff]
      %v427 = vld [vmem:[%s2 + $0x50] sm:$0xff]
      %v428 = vld [vmem:[%s2 + $0x58] sm:$0xff]
      %v429 = vld [vmem:[%s2 + $0x60] sm:$0xff]
      %v430 = vld [vmem:[%s2 + $0x68] sm:$0xff]
      %v431 = vld [vmem:[%s2 + $0x70] sm:$0xff]
      %v432 = vld [vmem:[%s2 + $0x78] sm:$0xff]
      %433 = vmatpush.msra.mxu0 %v432
      %434 = vmatpush.msra.mxu0 %v431
      %435 = vmatpush.msra.mxu0 %v430
      %436 = vmatpush.msra.mxu0 %v429
      %437 = vmatpush.msra.mxu0 %v428
      %438 = vmatpush.msra.mxu0 %v427
      %439 = vmatpush.msra.mxu0 %v426
      %440 = vmatpush.msra.mxu0 %v425
      %441 = vmatpush.msra.mxu0 %v424
      %442 = vmatpush.msra.mxu0 %v423
      %443 = vmatpush.msra.mxu0 %v422
      %444 = vmatpush.msra.mxu0 %v421
      %445 = vmatpush.msra.mxu0 %v420
      %446 = vmatpush.msra.mxu0 %v419
      %447 = vmatpush.msra.mxu0 %v418
      %448 = vmatpush.msra.mxu0 %v417
      %449 = vmatmul.f32.gmra.mxu0 %v415
      %v450 = vpop.f32.mrf.mxu0
      %v451 = vadd.f32 0.0, %v450
      %452 = vdwg.mxu0
      %v453 = vld [vmem:[%s3] sm:$0x1]
      %v454 = vadd.f32 %v451, %v453
      %455 = vst [vmem:[%s198] sm:$0x1] %v454
      %p456 = scmp.lt.s32.totalorder %s15, 1
      %s457 = scalar_select %p456, %s15, 1
      %s458 = scalar_lea.vmem %s4, %s457
      // Predicated region
      $region37: #{tsn_paligemma_direct_forward.1} parent=35 // pred_check
        %p459 = pneg %p122
      $region38: #{tsn_paligemma_direct_forward.1} parent=35 // pred_check_branch
        %461 = sbr.rel (%p459) target = $region40
      $region39: #{tsn_paligemma_direct_forward.1} parent=35 // pred_region
        _
      $region40: #{tsn_paligemma_direct_forward.1} parent=35 // pred_fallthru
        _
    $region36: #{tsn_paligemma_direct_forward.1} parent=5 // pred_fallthru
      _
    %p462 = scmp.le.s32.totalorder 2, %s10
    // Predicated region
    $region41: #{tsn_paligemma_direct_forward.1} parent=5 // pred_check
      %p463 = pneg %p462
    $region42: #{tsn_paligemma_direct_forward.1} parent=5 // pred_check_branch
      %465 = sbr.rel (%p463) target = $region44
    $region43: #{tsn_paligemma_direct_forward.1} parent=5 // pred_region
      %s466 = ssub.s32 %s10, 2
      // Predicated region
      $region45: #{tsn_paligemma_direct_forward.1} parent=43 // pred_check
        %p467 = pneg %p128
      $region46: #{tsn_paligemma_direct_forward.1} parent=43 // pred_check_branch
        %469 = sbr.rel (%p467) target = $region48
      $region47: #{tsn_paligemma_direct_forward.1} parent=43 // pred_region
        %p470 = scmp.lt.s32.totalorder %s16, 1
        %s471 = scalar_select %p470, %s16, 1
        %s472 = scalar_lea.vmem %s4, %s471
      $region48: #{tsn_paligemma_direct_forward.1} parent=43 // pred_fallthru
        _
    $region44: #{tsn_paligemma_direct_forward.1} parent=5 // pred_fallthru
      _
  $region6: #{tsn_paligemma_direct_forward.1} parent=0 // loop_footer
    %s14 = sadd.s32 1, %s10
  $region7: #{tsn_paligemma_direct_forward.1} parent=0 // loop_footer_branch
    %9 = sbr.rel target = $region3
  $region8: #{tsn_paligemma_direct_forward.1} parent=0 // loop_exit
    _

</llo_original>
